<compile_context>
chip_gen: v6e
topology: v6e:2x2x1
jax: 0.10.0
libtpu: 0.0.40
codegen_flags: <defaults>
</compile_context>

<pallas_src>
import jax
import jax.numpy as jnp
from jax.experimental import pallas as pl
from jax.experimental.pallas import tpu as pltpu

_LANE = 128
_MAX_LANE_WIDTH = 2048  # widest lane-dense slab we try (multiple of 128)


def _identity_kernel(x_ref, o_ref):
    # Pure copy of the current VMEM tile.
    o_ref[...] = x_ref[...]


def _physical_vmem_bytes():
    try:
        return int(pltpu.get_tpu_info().vmem_capacity_bytes)
    except Exception:
        return 64 << 20  # conservative (v7x-sized) fallback


def _copy_2d(x2d):
    """Tiled Pallas copy over a 2D array using full-width row blocks."""
    R, C = x2d.shape
    itemsize = x2d.dtype.itemsize

    vmem_phys = _physical_vmem_bytes()
    # ~4 blocks live (input + output, each double-buffered); keep well under VMEM.
    block_target = max(1 << 20, min(8 << 20, vmem_phys // 16))

    tile_r = block_target // max(1, C * itemsize)
    if tile_r >= R:
        tile_r = R  # full array dim: always a legal block dim
    else:
        tile_r = max(8, (tile_r // 8) * 8)  # keep second-to-last dim 8-aligned

    grid = (pl.cdiv(R, tile_r),)
    block_bytes = tile_r * C * itemsize
    vmem_limit = int(
        min(max(32 << 20, 4 * block_bytes + (8 << 20)), vmem_phys - (8 << 20))
    )

    return pl.pallas_call(
        _identity_kernel,
        out_shape=jax.ShapeDtypeStruct((R, C), x2d.dtype),
        grid_spec=pltpu.PrefetchScalarGridSpec(
            num_scalar_prefetch=0,
            grid=grid,
            in_specs=[pl.BlockSpec((tile_r, C), lambda i: (i, 0))],
            out_specs=pl.BlockSpec((tile_r, C), lambda i: (i, 0)),
        ),
        compiler_params=pltpu.CompilerParams(
            dimension_semantics=("parallel",),
            vmem_limit_bytes=vmem_limit,
        ),
        cost_estimate=pl.CostEstimate(
            flops=0,
            transcendentals=0,
            bytes_accessed=2 * R * C * itemsize,
        ),
    )(x2d)


def identity_agg(x, index):
    """JAX/Pallas equivalent of IdentityAgg.forward(x, index) -> x.

    `index` is accepted for signature parity but (as in the PyTorch module)
    is ignored.
    """
    del index  # unused, matching the reference module semantics
    orig_shape = x.shape
    n = x.size
    if n == 0:
        return x  # nothing to copy

    # Pick the widest lane-dense slab width (multiple of 128) dividing n.
    c2 = 0
    for k in range(_MAX_LANE_WIDTH // _LANE, 0, -1):
        cand = k * _LANE
        if n % cand == 0:
            c2 = cand
            break

    if c2 > 0:
        x2d = x.reshape(n // c2, c2)
    elif x.ndim >= 2:
        x2d = x.reshape(-1, orig_shape[-1])
    else:
        x2d = x.reshape(1, n)

    y2d = _copy_2d(x2d)
    return y2d.reshape(orig_shape)


if __name__ == "__main__":
    key = jax.random.PRNGKey(0)
    kx, ki = jax.random.split(key)
    # Small shapes: batch=2, nodes/seq=8, hidden=32
    x = jax.random.normal(kx, (2, 8, 32), dtype=jnp.float32)
    index = jax.random.randint(ki, (2, 8), 0, 8, dtype=jnp.int32)

    y = identity_agg(x, index)
    y = jax.block_until_ready(y)

    assert y.shape == x.shape
    assert y.dtype == x.dtype
    assert bool(jnp.array_equal(y, x)), "identity kernel output mismatch"
    print("KERNEL_OK")
</pallas_src>

<mosaic_0001>
module attributes {stable_mosaic.version = 11 : i64} {
  func.func @_identity_kernel(%arg0: i32, %arg1: memref<1x512xf32, #tpu.memory_space<vmem>>, %arg2: memref<1x512xf32, #tpu.memory_space<vmem>>) attributes {dimension_semantics = [#tpu.dimension_semantics<parallel>], iteration_bounds = array<i64: 1>, scalar_prefetch = 0 : i64, scratch_operands = 0 : i64, tpu.core_type = #tpu.core_type<tc>, window_params = [{transform_indices = @transform_0, window_bounds = array<i64: 1, 512>}, {transform_indices = @transform_1, window_bounds = array<i64: 1, 512>}]} {
    %c0 = arith.constant 0 : index
    %c0_0 = arith.constant 0 : index
    %0 = vector.load %arg1[%c0, %c0_0] : memref<1x512xf32, #tpu.memory_space<vmem>>, vector<1x512xf32>
    %c0_1 = arith.constant 0 : index
    %c0_2 = arith.constant 0 : index
    %1 = vector.load %arg2[%c0_1, %c0_2] : memref<1x512xf32, #tpu.memory_space<vmem>>, vector<1x512xf32>
    tpu.vector_store %arg2[%c0_1, %c0_2], %0 {strides = array<i32>} : memref<1x512xf32, #tpu.memory_space<vmem>>, vector<1x512xf32>,
    return
  }
  func.func @transform_0(%arg0: i32) -> (i32, i32) {
    %c0_i32 = arith.constant 0 : i32
    %c0_i32_0 = arith.constant 0 : i32
    return %arg0, %c0_i32 : i32, i32
  }
  func.func @transform_1(%arg0: i32) -> (i32, i32) {
    %c0_i32 = arith.constant 0 : i32
    %c0_i32_0 = arith.constant 0 : i32
    return %arg0, %c0_i32 : i32, i32
  }
}

</mosaic_0001>

<llo_original>
// kernel: tpu_custom_call.1
$region0: #{tpu_custom_call.1}
  #allocation0 [shape = 'u32[]', space=smem, size = 0x4, offset = 0x4, fixed_abs, tag = 'smem constant byte address 0x4 - core index']
  #allocation1 [shape = 'u32[144,128]{1,0:T(1,128)}', space=vmem, size = 0x12000, scoped, tag = 'internal scratch']
  %s0 = inlined_call_operand.hbm [shape: f32[1,512], index: 0, kind: input, shape index: {}]
  %s1 = inlined_call_operand.hbm [shape: f32[1,512], index: 1, kind: output, shape index: {}]
  %s2 = sld [smem:[#allocation0]]
  $region18: #{tpu_custom_call.1} parent=0
    _
  %s4 = ssub.s32 1, %s2
  %s5 = scalar_select 0, %s4, %s2
  $region1: #{tpu_custom_call.1} parent=0
    #allocation2 [shape = 'u8[2048]{0}', space=vmem, size = 0x800, scoped, tag = 'input window, operand 0, single buffered']
    #allocation3 [shape = 's32[1]{0}', space=sflag, size = 0x4, scoped, tag = 'scoped memory for tpu_custom_call.1']
    #allocation4 [shape = 's32[1]{0}', space=sflag, size = 0x4, scoped, tag = 'scoped memory for tpu_custom_call.1']
    #allocation5 [shape = 'u8[2048]{0}', space=vmem, size = 0x800, scoped, tag = 'output window, operand 0, single buffered']
    %6 = vsyncpa [#allocation3], 0
    %7 = vsyncpa [#allocation4], 0
    // Predicated region
    $region2: #{tpu_custom_call.1} parent=1 // pred_check
      _
    $region3: #{tpu_custom_call.1} parent=1 // pred_check_branch
      %9 = sbr.rel (0) target = $region5
    $region4: #{tpu_custom_call.1} parent=1 // pred_region
      %s11 = ssub.s32 64, 64
      %12 = vsyncadd [#allocation3], %s11
      %s14 = sshll.u32 [#allocation2], 4
      %s15 = int_to_ptr.vmem [resolvable:$true] %s14
      %17 = dma.hbm_to_vmem [thread:$0]  %s0, 64, %s15, [#allocation3]
    $region5: #{tpu_custom_call.1} parent=1 // pred_fallthru
      _
    // Predicated region
    $region6: #{tpu_custom_call.1} parent=1 // pred_check
      _
    $region7: #{tpu_custom_call.1} parent=1 // pred_check_branch
      %19 = sbr.rel (0) target = $region9
    $region8: #{tpu_custom_call.1} parent=1 // pred_region
      %20 = dma.done [#allocation3], 64
    $region9: #{tpu_custom_call.1} parent=1 // pred_fallthru
      _
    %v21 = vld [vmem:[#allocation2] sm:$0xf]
    %v22 = vlaneseq
    %vm23 = vcmp.ge.s32.totalorder %v22, 0
    %vm24 = vcmp.lt.s32.totalorder %v22, 512
    %vm25 = vmand %vm23, %vm24
    %26 = vst.msk [vmem:[#allocation5] sm:$0xf] %vm25, %v21
    // Predicated region
    $region10: #{tpu_custom_call.1} parent=1 // pred_check
      _
    $region11: #{tpu_custom_call.1} parent=1 // pred_check_branch
      %28 = sbr.rel (0) target = $region13
    $region12: #{tpu_custom_call.1} parent=1 // pred_region
      %s30 = ssub.s32 64, 64
      %31 = vsyncadd [#allocation4], %s30
      %s33 = sshll.u32 [#allocation5], 4
      %s34 = int_to_ptr.vmem [resolvable:$true] %s33
      %36 = dma.vmem_to_hbm [thread:$0]  %s34, 64, %s1, [#allocation4]
    $region13: #{tpu_custom_call.1} parent=1 // pred_fallthru
      _
    // Predicated region
    $region14: #{tpu_custom_call.1} parent=1 // pred_check
      _
    $region15: #{tpu_custom_call.1} parent=1 // pred_check_branch
      %38 = sbr.rel (0) target = $region17
    $region16: #{tpu_custom_call.1} parent=1 // pred_region
      %39 = dma.done [#allocation4], 64
    $region17: #{tpu_custom_call.1} parent=1 // pred_fallthru
      _
    %40 = vsyncpa [#allocation3], 1
    %41 = vsyncpa [#allocation4], 1

</llo_original>
